<compile_context>
chip_gen: v7x
topology: tpu7x:2x2x1
jax: 0.10.0
libtpu: 0.0.40
codegen_flags: <defaults>
</compile_context>

<pallas_src>
import functools
import math

import numpy as np

import jax
import jax.numpy as jnp
from jax import lax
from jax.experimental import pallas as pl
from jax.experimental.pallas import tpu as pltpu

MEAN = 300000000.0
STD = 200000000.0
OFFSET = 100000.0
POISS_SCALE = 100.0

# splitmix / murmur3-fmix32 mixing constants (uint32).
_GOLD = 0x9E3779B9
_MIX1 = 0x85EBCA6B
_MIX2 = 0xC2B2AE35
_ONE_F32_BITS = 0x3F800000  # bit pattern of float32 1.0

# Even Taylor coefficients of cos(2*pi*v) in s = v*v for |v| <= 0.5
# (max abs error ~1e-4 at the interval edge -- plenty for noise draws).
_TWO_PI = 2.0 * math.pi
_COS_TAYLOR = tuple(
    (-1.0) ** k * _TWO_PI ** (2 * k) / math.factorial(2 * k) for k in range(1, 7)
)


def _uniform_from_ids(ids_i32, salt_i32):
    """int32 element ids (+ int32 stream salt) -> float32 uniforms in [0, 1).

    splitmix-style hash done in uint32 (mul/xor/logical-shift only); the float
    is built by stuffing the top 23 random bits into a [1, 2) mantissa via a
    same-width bitcast, so no int->float convert instruction is needed.
    """
    h = lax.bitcast_convert_type(ids_i32 + salt_i32, jnp.uint32)
    h = h * jnp.uint32(_GOLD)
    h = h ^ (h >> 16)
    h = h * jnp.uint32(_MIX1)
    h = h ^ (h >> 13)
    h = h * jnp.uint32(_MIX2)
    h = h ^ (h >> 16)
    mant = (h >> 9) | jnp.uint32(_ONE_F32_BITS)
    return lax.bitcast_convert_type(mant, jnp.float32) - 1.0


def _cos2pi(u):
    """cos(2*pi*u) via range reduction to [-0.5, 0.5] + even polynomial (VPU only)."""
    v = u - jnp.floor(u + 0.5)
    s = v * v
    a1, a2, a3, a4, a5, a6 = _COS_TAYLOR
    p = a5 + s * a6
    p = a4 + s * p
    p = a3 + s * p
    p = a2 + s * p
    p = a1 + s * p
    return 1.0 + s * p


def _sin2pi(u):
    return _cos2pi(u - 0.25)


def _normal_pair(ids_i32, salt_a, salt_b):
    """Two independent N(0,1) fields from int32 ids (paired Box-Muller).

    One log + one sqrt + one cos + one sin per PAIR of normals.
    """
    u1 = _uniform_from_ids(ids_i32, salt_a)
    u2 = _uniform_from_ids(ids_i32, salt_b)
    r = jnp.sqrt(-2.0 * jnp.log(1.0 - u1))  # 1 - u1 in [2^-23, 1] -> log is safe
    return r * _cos2pi(u2), r * _sin2pi(u2)


def _poisson_noise_kernel(x_ref, salt_ref, o_ref, *, fold):
    # Block layout: rows = C*fold (channel-major, `fold` spatial rows per
    # channel), lanes = spatial tile of width T.  Every (batch, tile) grid step
    # derives its randomness from globally unique integer counters, so the two
    # grid axes are fully independent ("parallel" / megacore-safe).
    R, T = x_ref.shape
    b = pl.program_id(0)
    t = pl.program_id(1)
    lane_span = pl.num_programs(1) * T  # unique column ids across lane tiles

    halves = (T % 2) == 0
    th = T // 2 if halves else T

    # Per-element counters for N1 (torch.randn(input.size())).
    row = lax.broadcasted_iota(jnp.int32, (R, th), 0)
    col = lax.broadcasted_iota(jnp.int32, (R, th), 1) + t * T
    ids1 = (b * R + row) * lane_span + col

    # Per-pixel counters for N2 (torch.randn(N, 1, H, W) -> shared over channels):
    # they depend only on (batch, spatial position), never on the channel.
    rowp = lax.broadcasted_iota(jnp.int32, (fold, th), 0)
    colp = lax.broadcasted_iota(jnp.int32, (fold, th), 1) + t * T
    ids2 = (b * fold + rowp) * lane_span + colp

    s0, s1, s2, s3 = salt_ref[0], salt_ref[1], salt_ref[2], salt_ref[3]
    z_a, z_b = _normal_pair(ids1, s0, s1)  # per-element noise (N1), two lane halves
    g_a, g_b = _normal_pair(ids2, s2, s3)  # per-pixel noise (N2)

    reps = R // fold  # = C
    if fold == 1:
        pass  # (1, th) broadcasts against (R, th) in the arithmetic below
    elif reps > 1:
        g_a = jnp.concatenate([g_a] * reps, axis=0)  # replicate across channels
        g_b = jnp.concatenate([g_b] * reps, axis=0)

    def _noisy(x, n1, n2):
        y = x.astype(jnp.float32) + OFFSET + (STD * n1 + MEAN)
        y = jnp.maximum(y, 0.0)  # input[input <= 0] = 0
        return y + POISS_SCALE * jnp.sqrt(y) * n2

    if halves:
        o_ref[:, :th] = _noisy(x_ref[:, :th], z_a, g_a)
        o_ref[:, th:] = _noisy(x_ref[:, th:], z_b, g_b)
    else:
        # Odd tile width (rare): fall back to one normal per element.
        o_ref[...] = _noisy(x_ref[...], z_a, g_a)


def _pick_lane_tile(rows, lanes, target_bytes=2 << 20):
    """Lane-tile width: multiple of 256 (so Box-Muller halves stay 128-aligned),
    sized so one f32 (rows, tile) block is ~target_bytes.  With the explicit
    48 MiB vmem limit the 2x(in)+2x(out) buffers plus RNG temporaries fit on
    v5e/v6e/v7x; very large `rows` simply falls back to a 256-lane tile."""
    t = max(256, (target_bytes // (4 * max(rows, 1))) // 256 * 256)
    return lanes if t >= lanes else int(t)


@functools.partial(jax.jit, static_argnums=(2,))
def _poisson_noise_folded(x3, salts, fold):
    N, R, L = x3.shape
    T = _pick_lane_tile(R, L)
    n_t = pl.cdiv(L, T)
    kernel = functools.partial(_poisson_noise_kernel, fold=fold)
    in_bytes = jnp.dtype(x3.dtype).itemsize
    return pl.pallas_call(
        kernel,
        out_shape=jax.ShapeDtypeStruct((N, R, L), jnp.float32),
        grid=(N, n_t),
        in_specs=[
            pl.BlockSpec((None, R, T), lambda b, t: (b, 0, t)),
            pl.BlockSpec(memory_space=pltpu.MemorySpace.SMEM),  # 4 stream salts
        ],
        out_specs=pl.BlockSpec((None, R, T), lambda b, t: (b, 0, t)),
        compiler_params=pltpu.CompilerParams(
            dimension_semantics=("parallel", "parallel"),
            vmem_limit_bytes=48 * 1024 * 1024,
        ),
        # True HBM traffic is just read-x + write-out (noise is made in-kernel).
        cost_estimate=pl.CostEstimate(
            flops=64 * N * R * L,
            transcendentals=3 * N * R * L,
            bytes_accessed=(in_bytes + 4) * N * R * L,
        ),
    )(x3, salts)


def _host_mix32(x):
    x &= 0xFFFFFFFF
    x = ((x ^ (x >> 16)) * _MIX1) & 0xFFFFFFFF
    x = ((x ^ (x >> 13)) * _MIX2) & 0xFFFFFFFF
    return x ^ (x >> 16)


def _make_salts(seed):
    """Four well-separated 32-bit stream salts derived from the Python seed."""
    salts = [
        _host_mix32((seed & 0xFFFFFFFF) ^ ((_GOLD * (i + 1)) & 0xFFFFFFFF))
        for i in range(4)
    ]
    return jnp.asarray(np.asarray(salts, dtype=np.uint32).view(np.int32))


def poisson_noise_approx(x, seed=0):
    """JAX/Pallas equivalent of the PyTorch poisson_noise_approx.forward.

    x: (N, C, H, W) array (any real dtype; upcast to f32 inside the kernel).
    `seed` (Python int) controls the in-kernel Gaussian noise.
    """
    N, C, H, W = x.shape
    HW = H * W
    # Fold spatial rows into unused sublanes so C*fold is a multiple of 8
    # whenever the spatial size allows it (keeps vregs fully occupied).
    fold = 8 // math.gcd(C, 8)
    while fold > 1 and HW % fold:
        fold //= 2
    x3 = jnp.asarray(x).reshape(N, C * fold, HW // fold)
    out = _poisson_noise_folded(x3, _make_salts(seed), fold)
    return out.reshape(N, C, H, W)


if __name__ == "__main__":
    # Small shapes consistent with the module: batch=2, channels=4, spatial=16.
    N, C, H, W = 2, 4, 16, 16
    key = jax.random.PRNGKey(0)
    x = jax.random.uniform(key, (N, C, H, W), dtype=jnp.float32) * 1000.0

    out = jax.block_until_ready(poisson_noise_approx(x, seed=0))
    assert out.shape == (N, C, H, W) and out.dtype == jnp.float32
    assert bool(jnp.all(jnp.isfinite(out)))

    # Deterministic for a fixed seed; a different seed changes the noise.
    out_same = jax.block_until_ready(poisson_noise_approx(x, seed=0))
    out_diff = jax.block_until_ready(poisson_noise_approx(x, seed=1))
    assert bool(jnp.all(out == out_same))
    assert not bool(jnp.all(out == out_diff))

    # Statistical sanity (noise is drawn in-kernel, so the check is on the
    # distribution, not a bit-exact torch reference):
    #   y = clamp(x + 1e5 + N(3e8, 2e8), 0): E[y] ~ 3.06e8, std[y] ~ 1.89e8,
    #   P(y == 0) = Phi(-1.5) ~ 6.7%; the 100*sqrt(y)*N2 term adds ~1.7e6 std.
    m = float(jnp.mean(out))
    s = float(jnp.std(out))
    frac_zero = float(jnp.mean((out == 0.0).astype(jnp.float32)))
    assert 2.7e8 < m < 3.45e8, f"mean out of range: {m:.3e}"
    assert 1.5e8 < s < 2.3e8, f"std out of range: {s:.3e}"
    assert 0.02 < frac_zero < 0.13, f"clamp fraction out of range: {frac_zero:.4f}"

    print("KERNEL_OK")
</pallas_src>

<mosaic_0001>
module attributes {stable_mosaic.version = 11 : i64} {
  func.func @_poisson_noise_kernel(%arg0: i32, %arg1: i32, %arg2: memref<1x8x128xf32, #tpu.memory_space<vmem>>, %arg3: memref<4xi32, #tpu.memory_space<smem>>, %arg4: memref<1x8x128xf32, #tpu.memory_space<vmem>>) attributes {dimension_semantics = [#tpu.dimension_semantics<parallel>, #tpu.dimension_semantics<parallel>], iteration_bounds = array<i64: 2, 1>, scalar_prefetch = 0 : i64, scratch_operands = 0 : i64, tpu.core_type = #tpu.core_type<tc>, window_params = [{transform_indices = @transform_0, window_bounds = array<i64: 1, 8, 128>}, {transform_indices = @transform_1, window_bounds = array<i64: 4>}, {transform_indices = @transform_2, window_bounds = array<i64: 1, 8, 128>}]} {
    %0 = tpu.iota {dimensions = array<i32: 0>} : vector<8x64xi32>
    %1 = tpu.iota {dimensions = array<i32: 1>} : vector<8x64xi32>
    %c128_i32 = arith.constant 128 : i32
    %2 = arith.muli %arg1, %c128_i32 : i32
    %3 = vector.broadcast %2 : i32 to vector<8x64xi32>
    %4 = arith.addi %1, %3 : vector<8x64xi32>
    %c8_i32 = arith.constant 8 : i32
    %5 = arith.muli %arg0, %c8_i32 : i32
    %6 = vector.broadcast %5 : i32 to vector<8x64xi32>
    %7 = arith.addi %6, %0 : vector<8x64xi32>
    %c128_i32_0 = arith.constant 128 : i32
    %8 = vector.broadcast %c128_i32_0 : i32 to vector<8x64xi32>
    %9 = arith.muli %7, %8 : vector<8x64xi32>
    %10 = arith.addi %9, %4 : vector<8x64xi32>
    %11 = tpu.iota {dimensions = array<i32: 0>} : vector<2x64xi32>
    %12 = tpu.iota {dimensions = array<i32: 1>} : vector<2x64xi32>
    %c128_i32_1 = arith.constant 128 : i32
    %13 = arith.muli %arg1, %c128_i32_1 : i32
    %14 = vector.broadcast %13 : i32 to vector<2x64xi32>
    %15 = arith.addi %12, %14 : vector<2x64xi32>
    %c2_i32 = arith.constant 2 : i32
    %16 = arith.muli %arg0, %c2_i32 : i32
    %17 = vector.broadcast %16 : i32 to vector<2x64xi32>
    %18 = arith.addi %17, %11 : vector<2x64xi32>
    %c128_i32_2 = arith.constant 128 : i32
    %19 = vector.broadcast %c128_i32_2 : i32 to vector<2x64xi32>
    %20 = arith.muli %18, %19 : vector<2x64xi32>
    %21 = arith.addi %20, %15 : vector<2x64xi32>
    %c0 = arith.constant 0 : index
    %22 = memref.load %arg3[%c0] : memref<4xi32, #tpu.memory_space<smem>>
    %c1 = arith.constant 1 : index
    %23 = memref.load %arg3[%c1] : memref<4xi32, #tpu.memory_space<smem>>
    %c2 = arith.constant 2 : index
    %24 = memref.load %arg3[%c2] : memref<4xi32, #tpu.memory_space<smem>>
    %c3 = arith.constant 3 : index
    %25 = memref.load %arg3[%c3] : memref<4xi32, #tpu.memory_space<smem>>
    %26 = vector.broadcast %22 : i32 to vector<8x64xi32>
    %27 = arith.addi %10, %26 : vector<8x64xi32>
    %28 = tpu.bitcast %27 : vector<8x64xi32> -> vector<8x64xi32>
    %c-1640531527_i32 = arith.constant -1640531527 : i32
    %29 = vector.broadcast %c-1640531527_i32 : i32 to vector<8x64xi32>
    %30 = arith.muli %28, %29 : vector<8x64xi32>
    %c16_i32 = arith.constant 16 : i32
    %31 = vector.broadcast %c16_i32 : i32 to vector<8x64xi32>
    %32 = arith.shrui %30, %31 : vector<8x64xi32>
    %33 = arith.xori %30, %32 : vector<8x64xi32>
    %c-2048144789_i32 = arith.constant -2048144789 : i32
    %34 = vector.broadcast %c-2048144789_i32 : i32 to vector<8x64xi32>
    %35 = arith.muli %33, %34 : vector<8x64xi32>
    %c13_i32 = arith.constant 13 : i32
    %36 = vector.broadcast %c13_i32 : i32 to vector<8x64xi32>
    %37 = arith.shrui %35, %36 : vector<8x64xi32>
    %38 = arith.xori %35, %37 : vector<8x64xi32>
    %c-1028477387_i32 = arith.constant -1028477387 : i32
    %39 = vector.broadcast %c-1028477387_i32 : i32 to vector<8x64xi32>
    %40 = arith.muli %38, %39 : vector<8x64xi32>
    %c16_i32_3 = arith.constant 16 : i32
    %41 = vector.broadcast %c16_i32_3 : i32 to vector<8x64xi32>
    %42 = arith.shrui %40, %41 : vector<8x64xi32>
    %43 = arith.xori %40, %42 : vector<8x64xi32>
    %c9_i32 = arith.constant 9 : i32
    %44 = vector.broadcast %c9_i32 : i32 to vector<8x64xi32>
    %45 = arith.shrui %43, %44 : vector<8x64xi32>
    %c1065353216_i32 = arith.constant 1065353216 : i32
    %46 = vector.broadcast %c1065353216_i32 : i32 to vector<8x64xi32>
    %47 = arith.ori %45, %46 : vector<8x64xi32>
    %48 = tpu.bitcast %47 : vector<8x64xi32> -> vector<8x64xf32>
    %cst = arith.constant 1.000000e+00 : f32
    %49 = vector.broadcast %cst : f32 to vector<8x64xf32>
    %50 = arith.subf %48, %49 : vector<8x64xf32>
    %51 = vector.broadcast %23 : i32 to vector<8x64xi32>
    %52 = arith.addi %10, %51 : vector<8x64xi32>
    %53 = tpu.bitcast %52 : vector<8x64xi32> -> vector<8x64xi32>
    %c-1640531527_i32_4 = arith.constant -1640531527 : i32
    %54 = vector.broadcast %c-1640531527_i32_4 : i32 to vector<8x64xi32>
    %55 = arith.muli %53, %54 : vector<8x64xi32>
    %c16_i32_5 = arith.constant 16 : i32
    %56 = vector.broadcast %c16_i32_5 : i32 to vector<8x64xi32>
    %57 = arith.shrui %55, %56 : vector<8x64xi32>
    %58 = arith.xori %55, %57 : vector<8x64xi32>
    %c-2048144789_i32_6 = arith.constant -2048144789 : i32
    %59 = vector.broadcast %c-2048144789_i32_6 : i32 to vector<8x64xi32>
    %60 = arith.muli %58, %59 : vector<8x64xi32>
    %c13_i32_7 = arith.constant 13 : i32
    %61 = vector.broadcast %c13_i32_7 : i32 to vector<8x64xi32>
    %62 = arith.shrui %60, %61 : vector<8x64xi32>
    %63 = arith.xori %60, %62 : vector<8x64xi32>
    %c-1028477387_i32_8 = arith.constant -1028477387 : i32
    %64 = vector.broadcast %c-1028477387_i32_8 : i32 to vector<8x64xi32>
    %65 = arith.muli %63, %64 : vector<8x64xi32>
    %c16_i32_9 = arith.constant 16 : i32
    %66 = vector.broadcast %c16_i32_9 : i32 to vector<8x64xi32>
    %67 = arith.shrui %65, %66 : vector<8x64xi32>
    %68 = arith.xori %65, %67 : vector<8x64xi32>
    %c9_i32_10 = arith.constant 9 : i32
    %69 = vector.broadcast %c9_i32_10 : i32 to vector<8x64xi32>
    %70 = arith.shrui %68, %69 : vector<8x64xi32>
    %c1065353216_i32_11 = arith.constant 1065353216 : i32
    %71 = vector.broadcast %c1065353216_i32_11 : i32 to vector<8x64xi32>
    %72 = arith.ori %70, %71 : vector<8x64xi32>
    %73 = tpu.bitcast %72 : vector<8x64xi32> -> vector<8x64xf32>
    %cst_12 = arith.constant 1.000000e+00 : f32
    %74 = vector.broadcast %cst_12 : f32 to vector<8x64xf32>
    %75 = arith.subf %73, %74 : vector<8x64xf32>
    %cst_13 = arith.constant 1.000000e+00 : f32
    %76 = vector.broadcast %cst_13 : f32 to vector<8x64xf32>
    %77 = arith.subf %76, %50 : vector<8x64xf32>
    %78 = math.log %77 : vector<8x64xf32>
    %cst_14 = arith.constant -2.000000e+00 : f32
    %79 = vector.broadcast %cst_14 : f32 to vector<8x64xf32>
    %80 = arith.mulf %79, %78 : vector<8x64xf32>
    %81 = math.sqrt %80 : vector<8x64xf32>
    %cst_15 = arith.constant 5.000000e-01 : f32
    %82 = vector.broadcast %cst_15 : f32 to vector<8x64xf32>
    %83 = arith.addf %75, %82 : vector<8x64xf32>
    %84 = math.floor %83 : vector<8x64xf32>
    %85 = arith.subf %75, %84 : vector<8x64xf32>
    %86 = arith.mulf %85, %85 : vector<8x64xf32>
    %cst_16 = arith.constant 7.90353632 : f32
    %87 = vector.broadcast %cst_16 : f32 to vector<8x64xf32>
    %88 = arith.mulf %86, %87 : vector<8x64xf32>
    %cst_17 = arith.constant -26.4262562 : f32
    %89 = vector.broadcast %cst_17 : f32 to vector<8x64xf32>
    %90 = arith.addf %89, %88 : vector<8x64xf32>
    %91 = arith.mulf %86, %90 : vector<8x64xf32>
    %cst_18 = arith.constant 60.2446404 : f32
    %92 = vector.broadcast %cst_18 : f32 to vector<8x64xf32>
    %93 = arith.addf %92, %91 : vector<8x64xf32>
    %94 = arith.mulf %86, %93 : vector<8x64xf32>
    %cst_19 = arith.constant -85.4568176 : f32
    %95 = vector.broadcast %cst_19 : f32 to vector<8x64xf32>
    %96 = arith.addf %95, %94 : vector<8x64xf32>
    %97 = arith.mulf %86, %96 : vector<8x64xf32>
    %cst_20 = arith.constant 64.9393921 : f32
    %98 = vector.broadcast %cst_20 : f32 to vector<8x64xf32>
    %99 = arith.addf %98, %97 : vector<8x64xf32>
    %100 = arith.mulf %86, %99 : vector<8x64xf32>
    %cst_21 = arith.constant -19.7392082 : f32
    %101 = vector.broadcast %cst_21 : f32 to vector<8x64xf32>
    %102 = arith.addf %101, %100 : vector<8x64xf32>
    %103 = arith.mulf %86, %102 : vector<8x64xf32>
    %cst_22 = arith.constant 1.000000e+00 : f32
    %104 = vector.broadcast %cst_22 : f32 to vector<8x64xf32>
    %105 = arith.addf %104, %103 : vector<8x64xf32>
    %106 = arith.mulf %81, %105 : vector<8x64xf32>
    %cst_23 = arith.constant 2.500000e-01 : f32
    %107 = vector.broadcast %cst_23 : f32 to vector<8x64xf32>
    %108 = arith.subf %75, %107 : vector<8x64xf32>
    %cst_24 = arith.constant 5.000000e-01 : f32
    %109 = vector.broadcast %cst_24 : f32 to vector<8x64xf32>
    %110 = arith.addf %108, %109 : vector<8x64xf32>
    %111 = math.floor %110 : vector<8x64xf32>
    %112 = arith.subf %108, %111 : vector<8x64xf32>
    %113 = arith.mulf %112, %112 : vector<8x64xf32>
    %cst_25 = arith.constant 7.90353632 : f32
    %114 = vector.broadcast %cst_25 : f32 to vector<8x64xf32>
    %115 = arith.mulf %113, %114 : vector<8x64xf32>
    %cst_26 = arith.constant -26.4262562 : f32
    %116 = vector.broadcast %cst_26 : f32 to vector<8x64xf32>
    %117 = arith.addf %116, %115 : vector<8x64xf32>
    %118 = arith.mulf %113, %117 : vector<8x64xf32>
    %cst_27 = arith.constant 60.2446404 : f32
    %119 = vector.broadcast %cst_27 : f32 to vector<8x64xf32>
    %120 = arith.addf %119, %118 : vector<8x64xf32>
    %121 = arith.mulf %113, %120 : vector<8x64xf32>
    %cst_28 = arith.constant -85.4568176 : f32
    %122 = vector.broadcast %cst_28 : f32 to vector<8x64xf32>
    %123 = arith.addf %122, %121 : vector<8x64xf32>
    %124 = arith.mulf %113, %123 : vector<8x64xf32>
    %cst_29 = arith.constant 64.9393921 : f32
    %125 = vector.broadcast %cst_29 : f32 to vector<8x64xf32>
    %126 = arith.addf %125, %124 : vector<8x64xf32>
    %127 = arith.mulf %113, %126 : vector<8x64xf32>
    %cst_30 = arith.constant -19.7392082 : f32
    %128 = vector.broadcast %cst_30 : f32 to vector<8x64xf32>
    %129 = arith.addf %128, %127 : vector<8x64xf32>
    %130 = arith.mulf %113, %129 : vector<8x64xf32>
    %cst_31 = arith.constant 1.000000e+00 : f32
    %131 = vector.broadcast %cst_31 : f32 to vector<8x64xf32>
    %132 = arith.addf %131, %130 : vector<8x64xf32>
    %133 = arith.mulf %81, %132 : vector<8x64xf32>
    %134 = vector.broadcast %24 : i32 to vector<2x64xi32>
    %135 = arith.addi %21, %134 : vector<2x64xi32>
    %136 = tpu.bitcast %135 : vector<2x64xi32> -> vector<2x64xi32>
    %c-1640531527_i32_32 = arith.constant -1640531527 : i32
    %137 = vector.broadcast %c-1640531527_i32_32 : i32 to vector<2x64xi32>
    %138 = arith.muli %136, %137 : vector<2x64xi32>
    %c16_i32_33 = arith.constant 16 : i32
    %139 = vector.broadcast %c16_i32_33 : i32 to vector<2x64xi32>
    %140 = arith.shrui %138, %139 : vector<2x64xi32>
    %141 = arith.xori %138, %140 : vector<2x64xi32>
    %c-2048144789_i32_34 = arith.constant -2048144789 : i32
    %142 = vector.broadcast %c-2048144789_i32_34 : i32 to vector<2x64xi32>
    %143 = arith.muli %141, %142 : vector<2x64xi32>
    %c13_i32_35 = arith.constant 13 : i32
    %144 = vector.broadcast %c13_i32_35 : i32 to vector<2x64xi32>
    %145 = arith.shrui %143, %144 : vector<2x64xi32>
    %146 = arith.xori %143, %145 : vector<2x64xi32>
    %c-1028477387_i32_36 = arith.constant -1028477387 : i32
    %147 = vector.broadcast %c-1028477387_i32_36 : i32 to vector<2x64xi32>
    %148 = arith.muli %146, %147 : vector<2x64xi32>
    %c16_i32_37 = arith.constant 16 : i32
    %149 = vector.broadcast %c16_i32_37 : i32 to vector<2x64xi32>
    %150 = arith.shrui %148, %149 : vector<2x64xi32>
    %151 = arith.xori %148, %150 : vector<2x64xi32>
    %c9_i32_38 = arith.constant 9 : i32
    %152 = vector.broadcast %c9_i32_38 : i32 to vector<2x64xi32>
    %153 = arith.shrui %151, %152 : vector<2x64xi32>
    %c1065353216_i32_39 = arith.constant 1065353216 : i32
    %154 = vector.broadcast %c1065353216_i32_39 : i32 to vector<2x64xi32>
    %155 = arith.ori %153, %154 : vector<2x64xi32>
    %156 = tpu.bitcast %155 : vector<2x64xi32> -> vector<2x64xf32>
    %cst_40 = arith.constant 1.000000e+00 : f32
    %157 = vector.broadcast %cst_40 : f32 to vector<2x64xf32>
    %158 = arith.subf %156, %157 : vector<2x64xf32>
    %159 = vector.broadcast %25 : i32 to vector<2x64xi32>
    %160 = arith.addi %21, %159 : vector<2x64xi32>
    %161 = tpu.bitcast %160 : vector<2x64xi32> -> vector<2x64xi32>
    %c-1640531527_i32_41 = arith.constant -1640531527 : i32
    %162 = vector.broadcast %c-1640531527_i32_41 : i32 to vector<2x64xi32>
    %163 = arith.muli %161, %162 : vector<2x64xi32>
    %c16_i32_42 = arith.constant 16 : i32
    %164 = vector.broadcast %c16_i32_42 : i32 to vector<2x64xi32>
    %165 = arith.shrui %163, %164 : vector<2x64xi32>
    %166 = arith.xori %163, %165 : vector<2x64xi32>
    %c-2048144789_i32_43 = arith.constant -2048144789 : i32
    %167 = vector.broadcast %c-2048144789_i32_43 : i32 to vector<2x64xi32>
    %168 = arith.muli %166, %167 : vector<2x64xi32>
    %c13_i32_44 = arith.constant 13 : i32
    %169 = vector.broadcast %c13_i32_44 : i32 to vector<2x64xi32>
    %170 = arith.shrui %168, %169 : vector<2x64xi32>
    %171 = arith.xori %168, %170 : vector<2x64xi32>
    %c-1028477387_i32_45 = arith.constant -1028477387 : i32
    %172 = vector.broadcast %c-1028477387_i32_45 : i32 to vector<2x64xi32>
    %173 = arith.muli %171, %172 : vector<2x64xi32>
    %c16_i32_46 = arith.constant 16 : i32
    %174 = vector.broadcast %c16_i32_46 : i32 to vector<2x64xi32>
    %175 = arith.shrui %173, %174 : vector<2x64xi32>
    %176 = arith.xori %173, %175 : vector<2x64xi32>
    %c9_i32_47 = arith.constant 9 : i32
    %177 = vector.broadcast %c9_i32_47 : i32 to vector<2x64xi32>
    %178 = arith.shrui %176, %177 : vector<2x64xi32>
    %c1065353216_i32_48 = arith.constant 1065353216 : i32
    %179 = vector.broadcast %c1065353216_i32_48 : i32 to vector<2x64xi32>
    %180 = arith.ori %178, %179 : vector<2x64xi32>
    %181 = tpu.bitcast %180 : vector<2x64xi32> -> vector<2x64xf32>
    %cst_49 = arith.constant 1.000000e+00 : f32
    %182 = vector.broadcast %cst_49 : f32 to vector<2x64xf32>
    %183 = arith.subf %181, %182 : vector<2x64xf32>
    %cst_50 = arith.constant 1.000000e+00 : f32
    %184 = vector.broadcast %cst_50 : f32 to vector<2x64xf32>
    %185 = arith.subf %184, %158 : vector<2x64xf32>
    %186 = math.log %185 : vector<2x64xf32>
    %cst_51 = arith.constant -2.000000e+00 : f32
    %187 = vector.broadcast %cst_51 : f32 to vector<2x64xf32>
    %188 = arith.mulf %187, %186 : vector<2x64xf32>
    %189 = math.sqrt %188 : vector<2x64xf32>
    %cst_52 = arith.constant 5.000000e-01 : f32
    %190 = vector.broadcast %cst_52 : f32 to vector<2x64xf32>
    %191 = arith.addf %183, %190 : vector<2x64xf32>
    %192 = math.floor %191 : vector<2x64xf32>
    %193 = arith.subf %183, %192 : vector<2x64xf32>
    %194 = arith.mulf %193, %193 : vector<2x64xf32>
    %cst_53 = arith.constant 7.90353632 : f32
    %195 = vector.broadcast %cst_53 : f32 to vector<2x64xf32>
    %196 = arith.mulf %194, %195 : vector<2x64xf32>
    %cst_54 = arith.constant -26.4262562 : f32
    %197 = vector.broadcast %cst_54 : f32 to vector<2x64xf32>
    %198 = arith.addf %197, %196 : vector<2x64xf32>
    %199 = arith.mulf %194, %198 : vector<2x64xf32>
    %cst_55 = arith.constant 60.2446404 : f32
    %200 = vector.broadcast %cst_55 : f32 to vector<2x64xf32>
    %201 = arith.addf %200, %199 : vector<2x64xf32>
    %202 = arith.mulf %194, %201 : vector<2x64xf32>
    %cst_56 = arith.constant -85.4568176 : f32
    %203 = vector.broadcast %cst_56 : f32 to vector<2x64xf32>
    %204 = arith.addf %203, %202 : vector<2x64xf32>
    %205 = arith.mulf %194, %204 : vector<2x64xf32>
    %cst_57 = arith.constant 64.9393921 : f32
    %206 = vector.broadcast %cst_57 : f32 to vector<2x64xf32>
    %207 = arith.addf %206, %205 : vector<2x64xf32>
    %208 = arith.mulf %194, %207 : vector<2x64xf32>
    %cst_58 = arith.constant -19.7392082 : f32
    %209 = vector.broadcast %cst_58 : f32 to vector<2x64xf32>
    %210 = arith.addf %209, %208 : vector<2x64xf32>
    %211 = arith.mulf %194, %210 : vector<2x64xf32>
    %cst_59 = arith.constant 1.000000e+00 : f32
    %212 = vector.broadcast %cst_59 : f32 to vector<2x64xf32>
    %213 = arith.addf %212, %211 : vector<2x64xf32>
    %214 = arith.mulf %189, %213 : vector<2x64xf32>
    %cst_60 = arith.constant 2.500000e-01 : f32
    %215 = vector.broadcast %cst_60 : f32 to vector<2x64xf32>
    %216 = arith.subf %183, %215 : vector<2x64xf32>
    %cst_61 = arith.constant 5.000000e-01 : f32
    %217 = vector.broadcast %cst_61 : f32 to vector<2x64xf32>
    %218 = arith.addf %216, %217 : vector<2x64xf32>
    %219 = math.floor %218 : vector<2x64xf32>
    %220 = arith.subf %216, %219 : vector<2x64xf32>
    %221 = arith.mulf %220, %220 : vector<2x64xf32>
    %cst_62 = arith.constant 7.90353632 : f32
    %222 = vector.broadcast %cst_62 : f32 to vector<2x64xf32>
    %223 = arith.mulf %221, %222 : vector<2x64xf32>
    %cst_63 = arith.constant -26.4262562 : f32
    %224 = vector.broadcast %cst_63 : f32 to vector<2x64xf32>
    %225 = arith.addf %224, %223 : vector<2x64xf32>
    %226 = arith.mulf %221, %225 : vector<2x64xf32>
    %cst_64 = arith.constant 60.2446404 : f32
    %227 = vector.broadcast %cst_64 : f32 to vector<2x64xf32>
    %228 = arith.addf %227, %226 : vector<2x64xf32>
    %229 = arith.mulf %221, %228 : vector<2x64xf32>
    %cst_65 = arith.constant -85.4568176 : f32
    %230 = vector.broadcast %cst_65 : f32 to vector<2x64xf32>
    %231 = arith.addf %230, %229 : vector<2x64xf32>
    %232 = arith.mulf %221, %231 : vector<2x64xf32>
    %cst_66 = arith.constant 64.9393921 : f32
    %233 = vector.broadcast %cst_66 : f32 to vector<2x64xf32>
    %234 = arith.addf %233, %232 : vector<2x64xf32>
    %235 = arith.mulf %221, %234 : vector<2x64xf32>
    %cst_67 = arith.constant -19.7392082 : f32
    %236 = vector.broadcast %cst_67 : f32 to vector<2x64xf32>
    %237 = arith.addf %236, %235 : vector<2x64xf32>
    %238 = arith.mulf %221, %237 : vector<2x64xf32>
    %cst_68 = arith.constant 1.000000e+00 : f32
    %239 = vector.broadcast %cst_68 : f32 to vector<2x64xf32>
    %240 = arith.addf %239, %238 : vector<2x64xf32>
    %241 = arith.mulf %189, %240 : vector<2x64xf32>
    %242 = tpu.concatenate %214, %214, %214, %214 in 0 : vector<2x64xf32>, vector<2x64xf32>, vector<2x64xf32>, vector<2x64xf32> -> vector<8x64xf32>
    %243 = tpu.concatenate %241, %241, %241, %241 in 0 : vector<2x64xf32>, vector<2x64xf32>, vector<2x64xf32>, vector<2x64xf32> -> vector<8x64xf32>
    %c0_69 = arith.constant 0 : index
    %c0_70 = arith.constant 0 : index
    %c0_71 = arith.constant 0 : index
    %244 = vector.load %arg2[%c0_69, %c0_70, %c0_71] : memref<1x8x128xf32, #tpu.memory_space<vmem>>, vector<1x8x64xf32>
    %245 = vector.shape_cast %244 : vector<1x8x64xf32> to vector<8x64xf32>
    %cst_72 = arith.constant 1.000000e+05 : f32
    %246 = vector.broadcast %cst_72 : f32 to vector<8x64xf32>
    %247 = arith.addf %245, %246 : vector<8x64xf32>
    %cst_73 = arith.constant 2.000000e+08 : f32
    %248 = vector.broadcast %cst_73 : f32 to vector<8x64xf32>
    %249 = arith.mulf %248, %106 : vector<8x64xf32>
    %cst_74 = arith.constant 3.000000e+08 : f32
    %250 = vector.broadcast %cst_74 : f32 to vector<8x64xf32>
    %251 = arith.addf %249, %250 : vector<8x64xf32>
    %252 = arith.addf %247, %251 : vector<8x64xf32>
    %cst_75 = arith.constant 0.000000e+00 : f32
    %253 = vector.broadcast %cst_75 : f32 to vector<8x64xf32>
    %254 = arith.maximumf %252, %253 : vector<8x64xf32>
    %255 = math.sqrt %254 : vector<8x64xf32>
    %cst_76 = arith.constant 1.000000e+02 : f32
    %256 = vector.broadcast %cst_76 : f32 to vector<8x64xf32>
    %257 = arith.mulf %256, %255 : vector<8x64xf32>
    %258 = arith.mulf %257, %242 : vector<8x64xf32>
    %259 = arith.addf %254, %258 : vector<8x64xf32>
    %c0_77 = arith.constant 0 : index
    %c0_78 = arith.constant 0 : index
    %c0_79 = arith.constant 0 : index
    %260 = vector.load %arg4[%c0_77, %c0_78, %c0_79] : memref<1x8x128xf32, #tpu.memory_space<vmem>>, vector<1x8x64xf32>
    %261 = vector.shape_cast %260 : vector<1x8x64xf32> to vector<8x64xf32>
    %262 = vector.shape_cast %259 : vector<8x64xf32> to vector<1x8x64xf32>
    tpu.vector_store %arg4[%c0_77, %c0_78, %c0_79], %262 {strides = array<i32>} : memref<1x8x128xf32, #tpu.memory_space<vmem>>, vector<1x8x64xf32>,
    %c0_80 = arith.constant 0 : index
    %c0_81 = arith.constant 0 : index
    %c64 = arith.constant 64 : index
    %263 = vector.load %arg2[%c0_80, %c0_81, %c64] : memref<1x8x128xf32, #tpu.memory_space<vmem>>, vector<1x8x64xf32>
    %264 = vector.shape_cast %263 : vector<1x8x64xf32> to vector<8x64xf32>
    %cst_82 = arith.constant 1.000000e+05 : f32
    %265 = vector.broadcast %cst_82 : f32 to vector<8x64xf32>
    %266 = arith.addf %264, %265 : vector<8x64xf32>
    %cst_83 = arith.constant 2.000000e+08 : f32
    %267 = vector.broadcast %cst_83 : f32 to vector<8x64xf32>
    %268 = arith.mulf %267, %133 : vector<8x64xf32>
    %cst_84 = arith.constant 3.000000e+08 : f32
    %269 = vector.broadcast %cst_84 : f32 to vector<8x64xf32>
    %270 = arith.addf %268, %269 : vector<8x64xf32>
    %271 = arith.addf %266, %270 : vector<8x64xf32>
    %cst_85 = arith.constant 0.000000e+00 : f32
    %272 = vector.broadcast %cst_85 : f32 to vector<8x64xf32>
    %273 = arith.maximumf %271, %272 : vector<8x64xf32>
    %274 = math.sqrt %273 : vector<8x64xf32>
    %cst_86 = arith.constant 1.000000e+02 : f32
    %275 = vector.broadcast %cst_86 : f32 to vector<8x64xf32>
    %276 = arith.mulf %275, %274 : vector<8x64xf32>
    %277 = arith.mulf %276, %243 : vector<8x64xf32>
    %278 = arith.addf %273, %277 : vector<8x64xf32>
    %c0_87 = arith.constant 0 : index
    %c0_88 = arith.constant 0 : index
    %c64_89 = arith.constant 64 : index
    %279 = vector.load %arg4[%c0_87, %c0_88, %c64_89] : memref<1x8x128xf32, #tpu.memory_space<vmem>>, vector<1x8x64xf32>
    %280 = vector.shape_cast %279 : vector<1x8x64xf32> to vector<8x64xf32>
    %281 = vector.shape_cast %278 : vector<8x64xf32> to vector<1x8x64xf32>
    tpu.vector_store %arg4[%c0_87, %c0_88, %c64_89], %281 {strides = array<i32>} : memref<1x8x128xf32, #tpu.memory_space<vmem>>, vector<1x8x64xf32>,
    return
  }
  func.func @transform_0(%arg0: i32, %arg1: i32) -> (i32, i32, i32) {
    %c0_i32 = arith.constant 0 : i32
    %c0_i32_0 = arith.constant 0 : i32
    return %arg0, %c0_i32, %arg1 : i32, i32, i32
  }
  func.func @transform_1(%arg0: i32, %arg1: i32) -> i32 {
    %c0_i32 = arith.constant 0 : i32
    %c0_i32_0 = arith.constant 0 : i32
    return %c0_i32 : i32
  }
  func.func @transform_2(%arg0: i32, %arg1: i32) -> (i32, i32, i32) {
    %c0_i32 = arith.constant 0 : i32
    %c0_i32_0 = arith.constant 0 : i32
    return %arg0, %c0_i32, %arg1 : i32, i32, i32
  }
}

</mosaic_0001>

<llo_original>
// kernel: _poisson_noise_folded.1
$region0: #{_poisson_noise_folded.1}
  #allocation0 [shape = 'u32[]', space=smem, size = 0x4, offset = 0x4, fixed_abs, tag = 'smem constant byte address 0x4 - core index']
  #allocation1 [shape = 'u32[144,128]{1,0:T(1,128)}', space=vmem, size = 0x12000, scoped, tag = 'internal scratch']
  %s0 = inlined_call_operand.hbm [shape: f32[2,8,128], index: 0, kind: input, shape index: {}]
  %s1 = inlined_call_operand.vmem [shape: s32[4], index: 1, kind: input, shape index: {}]
  %s2 = inlined_call_operand.hbm [shape: f32[2,8,128], index: 2, kind: output, shape index: {}]
  %s3 = sld [smem:[#allocation0]]
  $region49: #{_poisson_noise_folded.1} parent=0
    _
  %s5 = ssub.s32 1, %s3
  %s6 = scalar_select 0, %s5, %s3
  $region1: #{_poisson_noise_folded.1} parent=0
    #allocation2 [shape = 'u8[8192]{0}', space=vmem, size = 0x2000, scoped, tag = 'input window, operand 0']
    #allocation3 [shape = 's32[2]{0}', space=sflag, size = 0x8, scoped, tag = 'scoped memory for _poisson_noise_folded.1']
    #allocation4 [shape = 's32[2]{0}', space=sflag, size = 0x8, scoped, tag = 'scoped memory for _poisson_noise_folded.1']
    #allocation5 [shape = 's32[2]{0}', space=sflag, size = 0x8, scoped, tag = 'scoped memory for _poisson_noise_folded.1']
    #allocation6 [shape = 'u8[512]{0}', space=smem, size = 0x200, scoped, tag = 'input window, operand 1, single buffered']
    #allocation7 [shape = 'u8[8192]{0}', space=vmem, size = 0x2000, scoped, tag = 'output window, operand 0']
    %7 = vsyncpa [#allocation3], 0
    %s8 = scalar_lea.sflag [#allocation3], 1
    %9 = vsyncpa %s8, 0
    %10 = vsyncpa [#allocation5], 0
    %11 = vsyncpa [#allocation4], 0
    %s12 = scalar_lea.sflag [#allocation4], 1
    %13 = vsyncpa %s12, 0
    loop: start=0, step=1, limit=4
    $region2: #{_poisson_noise_folded.1} parent=1 // loop_pre_header
      _
    $region3: #{_poisson_noise_folded.1} parent=1 // loop_header
      %s15 = sphi 0, %s19
      %p16 = scmp.ge.s32.totalorder %s15, 4
      %s22 = sphi 0, %s34
      %s23 = sphi 0, %s30
      %s24 = sphi 0, %s22
      %s25 = sphi 0, %s23
      %s26 = sphi 0, %s24
      %s27 = sphi 0, %s25
      %s39 = sphi 0, %s41
      %s42 = sphi 0, %s39
      %s43 = sphi 0, %s42
      %s59 = sphi 0, %s43
      %s63 = sphi 0, %s63
      %s65 = sphi 0, %s63
      %s66 = sphi 0, %s65
      %s80 = sphi 0, %s66
      %s88 = sphi 0, %s90
      %s91 = sphi 0, %s88
      %s92 = sphi 0, %s91
      %s108 = sphi 0, %s92
    $region4: #{_poisson_noise_folded.1} parent=1 // loop_header_branch
      %18 = sbr.rel (%p16) target = $region8
    $region5: #{_poisson_noise_folded.1} parent=1 // loop_body
      %s20 = ssub.s32 %s15, 1
      %s21 = ssub.s32 %s15, 2
      %s28 = sadd.s32 1, %s23
      %p29 = scmp.ge.s32.totalorder %s28, 1
      %s30 = scalar_select %p29, 0, %s28
      %s31 = sadd.s32 1, %s22
      %s32 = scalar_select %p29, %s31, %s22
      %p33 = scmp.ge.s32.totalorder %s32, 2
      %s34 = scalar_select %p33, 0, %s32
      %s35 = ssub.s32 %s22, %s34
      %s36 = ssub.s32 %s23, %s30
      %s37 = sor.u32 %s35, %s36
      %p38 = scmp.eq.s32.totalorder %s37, 0
      %s40 = sadd.s32 %s39, 1
      %s41 = scalar_select %p38, %s39, %s40
      %p44 = pneg %p38
      %p45 = scmp.eq.s32.totalorder %s15, 1
      %p46 = por %p44, %p45
      %p47 = scmp.ne.s32.totalorder %s39, %s42
      %p48 = scmp.eq.s32.totalorder %s15, 0
      %p49 = por %p47, %p48
      %p50 = scmp.ne.s32.totalorder %s39, %s42
      %p51 = scmp.eq.s32.totalorder %s20, 1
      %p52 = por %p50, %p51
      %p53 = scmp.ne.s32.totalorder %s42, %s43
      %p54 = scmp.eq.s32.totalorder %s20, 0
      %p55 = por %p53, %p54
      %p56 = scmp.ne.s32.totalorder %s42, %s43
      %p57 = scmp.eq.s32.totalorder %s21, 1
      %p58 = por %p56, %p57
      %p60 = scmp.ne.s32.totalorder %s43, %s59
      %p61 = scmp.eq.s32.totalorder %s21, 0
      %p62 = por %p60, %p61
      %s64 = sadd.s32 %s63, 1
      %p67 = scmp.eq.s32.totalorder %s15, 1
      %p68 = scmp.ne.s32.totalorder %s63, %s65
      %p69 = scmp.eq.s32.totalorder %s15, 0
      %p70 = por %p68, %p69
      %p71 = scmp.ne.s32.totalorder %s63, %s65
      %p72 = scmp.eq.s32.totalorder %s20, 1
      %p73 = por %p71, %p72
      %p74 = scmp.ne.s32.totalorder %s65, %s66
      %p75 = scmp.eq.s32.totalorder %s20, 0
      %p76 = por %p74, %p75
      %p77 = scmp.ne.s32.totalorder %s65, %s66
      %p78 = scmp.eq.s32.totalorder %s21, 1
      %p79 = por %p77, %p78
      %p81 = scmp.ne.s32.totalorder %s66, %s80
      %p82 = scmp.eq.s32.totalorder %s21, 0
      %p83 = por %p81, %p82
      %s84 = ssub.s32 %s22, %s34
      %s85 = ssub.s32 %s23, %s30
      %s86 = sor.u32 %s84, %s85
      %p87 = scmp.eq.s32.totalorder %s86, 0
      %s89 = sadd.s32 %s88, 1
      %s90 = scalar_select %p87, %s88, %s89
      %p93 = pneg %p87
      %p94 = scmp.eq.s32.totalorder %s15, 1
      %p95 = por %p93, %p94
      %p96 = scmp.ne.s32.totalorder %s88, %s91
      %p97 = scmp.eq.s32.totalorder %s15, 0
      %p98 = por %p96, %p97
      %p99 = scmp.ne.s32.totalorder %s88, %s91
      %p100 = scmp.eq.s32.totalorder %s20, 1
      %p101 = por %p99, %p100
      %p102 = scmp.ne.s32.totalorder %s91, %s92
      %p103 = scmp.eq.s32.totalorder %s20, 0
      %p104 = por %p102, %p103
      %p105 = scmp.ne.s32.totalorder %s91, %s92
      %p106 = scmp.eq.s32.totalorder %s21, 1
      %p107 = por %p105, %p106
      %p109 = scmp.ne.s32.totalorder %s92, %s108
      %p110 = scmp.eq.s32.totalorder %s21, 0
      %p111 = por %p109, %p110
      %p112 = scmp.le.s32.totalorder 1, %s15
      %p113 = scmp.lt.s32.totalorder %s15, 3
      %p114 = pnand %p112, %p113
      %p115 = pneg %p114
      // Predicated region
      $region9: #{_poisson_noise_folded.1} parent=5 // pred_check
        _
      $region10: #{_poisson_noise_folded.1} parent=5 // pred_check_branch
        %117 = sbr.rel (%p114) target = $region12
      $region11: #{_poisson_noise_folded.1} parent=5 // pred_region
        %s118 = ssub.s32 %s15, 1
        // Predicated region
        $region13: #{_poisson_noise_folded.1} parent=11 // pred_check
          %p119 = pneg %p76
        $region14: #{_poisson_noise_folded.1} parent=11 // pred_check_branch
          %121 = sbr.rel (%p119) target = $region16
        $region15: #{_poisson_noise_folded.1} parent=11 // pred_region
          %s123 = ssub.s32 16, 16
          %124 = vsyncadd [#allocation5], %s123
          %s126 = sshll.u32 %s1, 4
          %s127 = int_to_ptr.vmem [resolvable:$true] %s126
          %129 = dma.vmem_to_smem %s127, 16, [#allocation6], [#allocation5]
        $region16: #{_poisson_noise_folded.1} parent=11 // pred_fallthru
          _
      $region12: #{_poisson_noise_folded.1} parent=5 // pred_fallthru
        _
      %p130 = scmp.lt.s32.totalorder %s15, 2
      // Predicated region
      $region17: #{_poisson_noise_folded.1} parent=5 // pred_check
        %p131 = pneg %p130
      $region18: #{_poisson_noise_folded.1} parent=5 // pred_check_branch
        %133 = sbr.rel (%p131) target = $region20
      $region19: #{_poisson_noise_folded.1} parent=5 // pred_region
        // Predicated region
        $region21: #{_poisson_noise_folded.1} parent=19 // pred_check
          %p134 = pneg %p49
        $region22: #{_poisson_noise_folded.1} parent=19 // pred_check_branch
          %136 = sbr.rel (%p134) target = $region24
        $region23: #{_poisson_noise_folded.1} parent=19 // pred_region
          %s137 = sand.u32 %s39, 1
          %s138 = scalar_lea.sflag [#allocation3], %s137
          %s139 = sand.u32 %s39, 1
          %s140 = smul.addr %s139, 8
          %s141 = scalar_lea.vmem [#allocation2], %s140
          %s143 = ssub.s32 128, 128
          %144 = vsyncadd %s138, %s143
          %s145 = sadd.s32 %s23, %s22
          %s146 = smul.addr %s145, 128
          %s147 = scalar_lea.hbm %s0, %s146
          %s149 = sshll.u32 %s141, 4
          %s150 = int_to_ptr.vmem [resolvable:$true] %s149
          %152 = dma.hbm_to_vmem [thread:$0]  %s147, 128, %s150, %s138
        $region24: #{_poisson_noise_folded.1} parent=19 // pred_fallthru
          _
      $region20: #{_poisson_noise_folded.1} parent=5 // pred_fallthru
        _
      %p153 = scmp.le.s32.totalorder 1, %s15
      %p154 = scmp.lt.s32.totalorder %s15, 3
      %p155 = pnand %p153, %p154
      %p156 = pneg %p155
      // Predicated region
      $region25: #{_poisson_noise_folded.1} parent=5 // pred_check
        _
      $region26: #{_poisson_noise_folded.1} parent=5 // pred_check_branch
        %158 = sbr.rel (%p155) target = $region28
      $region27: #{_poisson_noise_folded.1} parent=5 // pred_region
        %s159 = ssub.s32 %s15, 1
        %s160 = sand.u32 %s42, 1
        %s161 = scalar_lea.sflag [#allocation3], %s160
        %s162 = sand.u32 %s42, 1
        %s163 = smul.addr %s162, 8
        %s164 = scalar_lea.vmem [#allocation2], %s163
        // Predicated region
        $region29: #{_poisson_noise_folded.1} parent=27 // pred_check
          %p165 = pneg %p55
        $region30: #{_poisson_noise_folded.1} parent=27 // pred_check_branch
          %167 = sbr.rel (%p165) target = $region32
        $region31: #{_poisson_noise_folded.1} parent=27 // pred_region
          %168 = dma.done %s161, 128
        $region32: #{_poisson_noise_folded.1} parent=27 // pred_fallthru
          _
        // Predicated region
        $region33: #{_poisson_noise_folded.1} parent=27 // pred_check
          %p169 = pneg %p76
        $region34: #{_poisson_noise_folded.1} parent=27 // pred_check_branch
          %171 = sbr.rel (%p169) target = $region36
        $region35: #{_poisson_noise_folded.1} parent=27 // pred_region
          %172 = dma.done [#allocation5], 16
        $region36: #{_poisson_noise_folded.1} parent=27 // pred_fallthru
          _
        %173 = sfence
        %s174 = sand.u32 %s42, 1
        %s175 = scalar_lea.sflag [#allocation3], %s174
        %s176 = sand.u32 %s42, 1
        %s177 = smul.addr %s176, 8
        %s178 = scalar_lea.vmem [#allocation2], %s177
        %p179 = pneg %p55
        %p180 = pneg %p52
        %p181 = pneg %p76
        %p182 = pneg %p73
        %p183 = pneg %p104
        %p184 = pneg %p101
        %s185 = sand.u32 %s91, 1
        %s186 = scalar_lea.sflag [#allocation4], %s185
        %s187 = sand.u32 %s91, 1
        %s188 = smul.addr %s187, 8
        %s189 = scalar_lea.vmem [#allocation7], %s188
        %v190 = vlaneseq
        %v191 = vshrl.u32 %v190, 7
        %v192 = vlaneseq
        %v193 = vand.u32 %v192, 127
        %s194 = smul.u32 %s25, 128
        %v195 = vstv %s194
        %v196 = vadd.s32 %v193, %v195
        %s197 = smul.u32 %s24, 8
        %v198 = vstv %s197
        %v199 = vadd.s32 %v198, %v191
        %v200 = vmul.u32 %v199, 128
        %v201 = vadd.s32 %v200, %v196
        %s202 = smul.u32 %s24, 2
        %v203 = vstv %s202
        %v204 = vadd.s32 %v203, %v191
        %v205 = vmul.u32 %v204, 128
        %v206 = vadd.s32 %v205, %v196
        %s207 = sld [smem:[#allocation6]]
        %s208 = sld [smem:[#allocation6 + $0x1]]
        %s209 = sld [smem:[#allocation6 + $0x2]]
        %s210 = sld [smem:[#allocation6 + $0x3]]
        %v211 = vstv %s207
        %v212 = vadd.s32 %v201, %v211
        %v213 = vmul.u32 %v212, 2654435769
        %v214 = vshrl.u32 %v213, 16
        %v215 = vxor.u32 %v213, %v214
        %v216 = vmul.u32 %v215, 2246822507
        %v217 = vshrl.u32 %v216, 13
        %v218 = vxor.u32 %v216, %v217
        %v219 = vmul.u32 %v218, 3266489909
        %v220 = vshrl.u32 %v219, 16
        %v221 = vxor.u32 %v219, %v220
        %v222 = vshrl.u32 %v221, 9
        %v223 = vor.u32 %v222, 1065353216
        %v225 = vsub.f32 %v223, 1.0
        %v226 = vstv %s208
        %v227 = vadd.s32 %v201, %v226
        %v228 = vmul.u32 %v227, 2654435769
        %v229 = vshrl.u32 %v228, 16
        %v230 = vxor.u32 %v228, %v229
        %v231 = vmul.u32 %v230, 2246822507
        %v232 = vshrl.u32 %v231, 13
        %v233 = vxor.u32 %v231, %v232
        %v234 = vmul.u32 %v233, 3266489909
        %v235 = vshrl.u32 %v234, 16
        %v236 = vxor.u32 %v234, %v235
        %v237 = vshrl.u32 %v236, 9
        %v238 = vor.u32 %v237, 1065353216
        %v240 = vsub.f32 %v238, 1.0
        %v241 = vsub.f32 1.0, %v225
        %v242 = vlog2.pop %v241
        %v243 = vmul.f32 %v242, 0.6931472
        %v244 = vmul.f32 %v243, -2.0
        %v245 = vrsqrt.pop %v244
        %v246 = vmul.f32 %v244, %v245
        %vm247 = vcmp.eq.f32.partialorder %v244, inf
        %v248 = vsel %vm247, %v244, %v246
        %vm249 = vcmp.eq.f32.partialorder %v244, 0.0
        %v250 = vand.u32 %v244, 2147483648
        %v251 = vsel %vm249, %v250, %v248
        %v252 = vadd.f32 %v240, 0.5
        %v253 = vfloor.f32 %v252
        %v254 = vsub.f32 %v240, %v253
        %v255 = vmul.f32 %v254, %v254
        %v256 = vmul.f32 %v255, 7.9035363
        %v257 = vadd.f32 %v256, -26.426256
        %v258 = vmul.f32 %v255, %v257
        %v259 = vadd.f32 %v258, 60.24464
        %v260 = vmul.f32 %v255, %v259
        %v261 = vadd.f32 %v260, -85.45682
        %v262 = vmul.f32 %v255, %v261
        %v263 = vadd.f32 %v262, 64.93939
        %v264 = vmul.f32 %v255, %v263
        %v265 = vadd.f32 %v264, -19.739208
        %v266 = vmul.f32 %v255, %v265
        %v267 = vadd.f32 %v266, 1.0
        %v268 = vmul.f32 %v251, %v267
        %v269 = vsub.f32 %v240, 0.25
        %v270 = vadd.f32 %v269, 0.5
        %v271 = vfloor.f32 %v270
        %v272 = vsub.f32 %v269, %v271
        %v273 = vmul.f32 %v272, %v272
        %v274 = vmul.f32 %v273, 7.9035363
        %v275 = vadd.f32 %v274, -26.426256
        %v276 = vmul.f32 %v273, %v275
        %v277 = vadd.f32 %v276, 60.24464
        %v278 = vmul.f32 %v273, %v277
        %v279 = vadd.f32 %v278, -85.45682
        %v280 = vmul.f32 %v273, %v279
        %v281 = vadd.f32 %v280, 64.93939
        %v282 = vmul.f32 %v273, %v281
        %v283 = vadd.f32 %v282, -19.739208
        %v284 = vmul.f32 %v273, %v283
        %v285 = vadd.f32 %v284, 1.0
        %v286 = vmul.f32 %v251, %v285
        %v287 = vstv %s209
        %v288 = vadd.s32 %v206, %v287
        %v289 = vmul.u32 %v288, 2654435769
        %v290 = vshrl.u32 %v289, 16
        %v291 = vxor.u32 %v289, %v290
        %v292 = vmul.u32 %v291, 2246822507
        %v293 = vshrl.u32 %v292, 13
        %v294 = vxor.u32 %v292, %v293
        %v295 = vmul.u32 %v294, 3266489909
        %v296 = vshrl.u32 %v295, 16
        %v297 = vxor.u32 %v295, %v296
        %v298 = vshrl.u32 %v297, 9
        %v299 = vor.u32 %v298, 1065353216
        %v301 = vsub.f32 %v299, 1.0
        %v302 = vstv %s210
        %v303 = vadd.s32 %v206, %v302
        %v304 = vmul.u32 %v303, 2654435769
        %v305 = vshrl.u32 %v304, 16
        %v306 = vxor.u32 %v304, %v305
        %v307 = vmul.u32 %v306, 2246822507
        %v308 = vshrl.u32 %v307, 13
        %v309 = vxor.u32 %v307, %v308
        %v310 = vmul.u32 %v309, 3266489909
        %v311 = vshrl.u32 %v310, 16
        %v312 = vxor.u32 %v310, %v311
        %v313 = vshrl.u32 %v312, 9
        %v314 = vor.u32 %v313, 1065353216
        %v316 = vsub.f32 %v314, 1.0
        %v317 = vsub.f32 1.0, %v301
        %v318 = vlog2.pop %v317
        %v319 = vmul.f32 %v318, 0.6931472
        %v320 = vmul.f32 %v319, -2.0
        %v321 = vrsqrt.pop %v320
        %v322 = vmul.f32 %v320, %v321
        %vm323 = vcmp.eq.f32.partialorder %v320, inf
        %v324 = vsel %vm323, %v320, %v322
        %vm325 = vcmp.eq.f32.partialorder %v320, 0.0
        %v326 = vand.u32 %v320, 2147483648
        %v327 = vsel %vm325, %v326, %v324
        %v328 = vadd.f32 %v316, 0.5
        %v329 = vfloor.f32 %v328
        %v330 = vsub.f32 %v316, %v329
        %v331 = vmul.f32 %v330, %v330
        %v332 = vmul.f32 %v331, 7.9035363
        %v333 = vadd.f32 %v332, -26.426256
        %v334 = vmul.f32 %v331, %v333
        %v335 = vadd.f32 %v334, 60.24464
        %v336 = vmul.f32 %v331, %v335
        %v337 = vadd.f32 %v336, -85.45682
        %v338 = vmul.f32 %v331, %v337
        %v339 = vadd.f32 %v338, 64.93939
        %v340 = vmul.f32 %v331, %v339
        %v341 = vadd.f32 %v340, -19.739208
        %v342 = vmul.f32 %v331, %v341
        %v343 = vadd.f32 %v342, 1.0
        %v344 = vmul.f32 %v327, %v343
        %v345 = vsub.f32 %v316, 0.25
        %v346 = vadd.f32 %v345, 0.5
        %v347 = vfloor.f32 %v346
        %v348 = vsub.f32 %v345, %v347
        %v349 = vmul.f32 %v348, %v348
        %v350 = vmul.f32 %v349, 7.9035363
        %v351 = vadd.f32 %v350, -26.426256
        %v352 = vmul.f32 %v349, %v351
        %v353 = vadd.f32 %v352, 60.24464
        %v354 = vmul.f32 %v349, %v353
        %v355 = vadd.f32 %v354, -85.45682
        %v356 = vmul.f32 %v349, %v355
        %v357 = vadd.f32 %v356, 64.93939
        %v358 = vmul.f32 %v349, %v357
        %v359 = vadd.f32 %v358, -19.739208
        %v360 = vmul.f32 %v349, %v359
        %v361 = vadd.f32 %v360, 1.0
        %v362 = vmul.f32 %v327, %v361
        %v364 = vrot.slane %v344, 6
        %v366 = vrot.slane %v344, 4
        %v368 = vrot.slane %v344, 2
        %vm370 = vcmask 1041408
        %v371 = vsel %vm370, %v344, %v364
        %vm372 = vcmask 1043456
        %v373 = vsel %vm372, %v371, %v366
        %vm374 = vcmask 1045504
        %v375 = vsel %vm374, %v373, %v368
        %v377 = vrot.slane %v362, 6
        %v379 = vrot.slane %v362, 4
        %v381 = vrot.slane %v362, 2
        %v383 = vsel %vm370, %v362, %v377
        %v384 = vsel %vm372, %v383, %v379
        %v385 = vsel %vm374, %v384, %v381
        %v386 = vld [vmem:[%s164] sm:$0xff]
        %v387 = vadd.f32 %v386, 100000.0
        %v388 = vmul.f32 %v268, 2e+08
        %v389 = vadd.f32 %v388, 3e+08
        %v390 = vadd.f32 %v387, %v389
        %v391 = vmax.f32 %v390, 0.0
        %v392 = vrsqrt.pop %v391
        %v393 = vmul.f32 %v391, %v392
        %vm394 = vcmp.eq.f32.partialorder %v391, inf
        %v395 = vsel %vm394, %v391, %v393
        %vm396 = vcmp.eq.f32.partialorder %v391, 0.0
        %v397 = vand.u32 %v391, 2147483648
        %v398 = vsel %vm396, %v397, %v395
        %v399 = vmul.f32 %v398, 100.0
        %v400 = vmul.f32 %v399, %v375
        %v401 = vadd.f32 %v391, %v400
        %vm402 = vcmask 523264
        %403 = vst.msk [vmem:[%s189] sm:$0xff] %vm402, %v401
        %v404 = vld [vmem:[%s164] sm:$0xff]
        %v405 = vadd.f32 %v404, 100000.0
        %v406 = vmul.f32 %v286, 2e+08
        %v407 = vadd.f32 %v406, 3e+08
        %409 = vrot.lane.b32.xlu0 %v407, 64
        %v410 = vpop.permute.xlu0 %409
        %v412 = vadd.f32 %v405, %v410
        %v413 = vmax.f32 %v412, 0.0
        %v414 = vrsqrt.pop %v413
        %v415 = vmul.f32 %v413, %v414
        %vm416 = vcmp.eq.f32.partialorder %v413, inf
        %v417 = vsel %vm416, %v413, %v415
        %vm418 = vcmp.eq.f32.partialorder %v413, 0.0
        %v419 = vand.u32 %v413, 2147483648
        %v420 = vsel %vm418, %v419, %v417
        %v421 = vmul.f32 %v420, 100.0
        %423 = vrot.lane.b32.xlu0 %v385, 64
        %v424 = vpop.permute.xlu0 %423
        %v426 = vmul.f32 %v421, %v424
        %v427 = vadd.f32 %v413, %v426
        %vm428 = vcmask 1048064
        %429 = vst.msk [vmem:[%s189] sm:$0xff] %vm428, %v427
        %s430 = sand.u32 %s91, 1
        %s431 = scalar_lea.sflag [#allocation4], %s430
        %s432 = sand.u32 %s91, 1
        %s433 = smul.addr %s432, 8
        %s434 = scalar_lea.vmem [#allocation7], %s433
        // Predicated region
        $region37: #{_poisson_noise_folded.1} parent=27 // pred_check
          %p435 = pneg %p101
        $region38: #{_poisson_noise_folded.1} parent=27 // pred_check_branch
          %437 = sbr.rel (%p435) target = $region40
        $region39: #{_poisson_noise_folded.1} parent=27 // pred_region
          %s439 = ssub.s32 128, 128
          %440 = vsyncadd %s431, %s439
          %s441 = sadd.s32 %s25, %s24
          %s442 = smul.addr %s441, 128
          %s443 = scalar_lea.hbm %s2, %s442
          %s445 = sshll.u32 %s434, 4
          %s446 = int_to_ptr.vmem [resolvable:$true] %s445
          %448 = dma.vmem_to_hbm [thread:$0]  %s446, 128, %s443, %s431
        $region40: #{_poisson_noise_folded.1} parent=27 // pred_fallthru
          _
      $region28: #{_poisson_noise_folded.1} parent=5 // pred_fallthru
        _
      %p449 = scmp.le.s32.totalorder 2, %s15
      // Predicated region
      $region41: #{_poisson_noise_folded.1} parent=5 // pred_check
        %p450 = pneg %p449
      $region42: #{_poisson_noise_folded.1} parent=5 // pred_check_branch
        %452 = sbr.rel (%p450) target = $region44
      $region43: #{_poisson_noise_folded.1} parent=5 // pred_region
        %s453 = ssub.s32 %s15, 2
        // Predicated region
        $region45: #{_poisson_noise_folded.1} parent=43 // pred_check
          %p454 = pneg %p107
        $region46: #{_poisson_noise_folded.1} parent=43 // pred_check_branch
          %456 = sbr.rel (%p454) target = $region48
        $region47: #{_poisson_noise_folded.1} parent=43 // pred_region
          %s457 = sand.u32 %s92, 1
          %s458 = scalar_lea.sflag [#allocation4], %s457
          %s459 = sand.u32 %s92, 1
          %s460 = smul.addr %s459, 8
          %s461 = scalar_lea.vmem [#allocation7], %s460
          %462 = dma.done %s458, 128
        $region48: #{_poisson_noise_folded.1} parent=43 // pred_fallthru
          _
      $region44: #{_poisson_noise_folded.1} parent=5 // pred_fallthru
        _
    $region6: #{_poisson_noise_folded.1} parent=1 // loop_footer
      %s19 = sadd.s32 1, %s15
    $region7: #{_poisson_noise_folded.1} parent=1 // loop_footer_branch
      %14 = sbr.rel target = $region3
    $region8: #{_poisson_noise_folded.1} parent=1 // loop_exit
      _
    %463 = vsyncpa [#allocation3], 1
    %s464 = scalar_lea.sflag [#allocation3], 1
    %465 = vsyncpa %s464, 1
    %466 = vsyncpa [#allocation4], 1
    %s467 = scalar_lea.sflag [#allocation4], 1
    %468 = vsyncpa %s467, 1
    %469 = vsyncpa [#allocation5], 1
    %s470 = scalar_lea.sflag [#allocation5], 1
    %471 = vsyncpa %s470, 1

</llo_original>
